<compile_context>
chip_gen: v6e
topology: v6e:2x2x1
jax: 0.10.0
libtpu: 0.0.40
codegen_flags: <defaults>
</compile_context>

<pallas_src>
import functools

import jax
import jax.numpy as jnp
from jax.experimental import pallas as pl
from jax.experimental.pallas import tpu as pltpu

TM_CAP = 256   # M-tile cap (feeds v6e/v7x 256-wide MXU; v5e decomposes internally)
TN_CAP = 128   # N-tile cap (keeps >=2 j-blocks on most layers for v7x's 2 TensorCores)
ALIGN = 16     # bf16 sublane packing granularity


def _ceil_to(v, m):
    return ((v + m - 1) // m) * m


def _pick_tile(dim, cap):
    if dim >= cap:
        return cap
    return _ceil_to(dim, ALIGN)


# ----------------------------------------------------------------------------
# Pallas kernels
# ----------------------------------------------------------------------------
def _mm_bn_kernel(x_ref, w_ref, s_ref, b_ref, o_ref, *, relu):
    """out = act((X @ W) * scale + bias)  — bf16 MXU operands, f32 accumulate/epilogue."""
    acc = jnp.dot(x_ref[...], w_ref[...], preferred_element_type=jnp.float32)
    y = acc * s_ref[...] + b_ref[...]
    if relu:
        y = jnp.maximum(y, 0.0)
    o_ref[...] = y.astype(o_ref.dtype)


def _mm_bn_res_kernel(x_ref, w_ref, s_ref, b_ref, r_ref, o_ref, *, relu):
    """out = act((X @ W) * scale + bias + residual)   (bottleneck tail, fused)."""
    acc = jnp.dot(x_ref[...], w_ref[...], preferred_element_type=jnp.float32)
    y = acc * s_ref[...] + b_ref[...] + r_ref[...].astype(jnp.float32)
    if relu:
        y = jnp.maximum(y, 0.0)
    o_ref[...] = y.astype(o_ref.dtype)


def _max_reduce_kernel(x_ref, o_ref):
    # x_ref: (taps, TR, 128) -> max over taps
    o_ref[...] = jnp.max(x_ref[...], axis=0)


# ----------------------------------------------------------------------------
# Kernel wrappers
# ----------------------------------------------------------------------------
def fused_matmul_bn(x, w, scale, bias, residual=None, relu=True):
    """x:[M,K] bf16 @ w:[Kp,N] bf16 (K pre-padded to Kp at build time) with f32 per-channel
    scale/bias epilogue, optional bf16 residual add and ReLU.  Full-K blocks: no K grid axis,
    no accumulator scratch, single dot + epilogue per (i, j) grid step."""
    M, K = x.shape
    Kp, N = w.shape
    TM = _pick_tile(M, TM_CAP)
    TN = _pick_tile(N, TN_CAP)
    Mp = _ceil_to(M, TM)
    Np = _ceil_to(N, TN)

    # Glue pads only fire for irregular shapes (conv1's K=147->160; nothing else in resnet50).
    if Kp != K:
        x = jnp.pad(x, ((0, 0), (0, Kp - K)))
    if Mp != M:
        x = jnp.pad(x, ((0, Mp - M), (0, 0)))
        if residual is not None:
            residual = jnp.pad(residual, ((0, Mp - M), (0, 0)))
    if Np != N:
        w = jnp.pad(w, ((0, 0), (0, Np - N)))
        scale = jnp.pad(scale, ((0, 0), (0, Np - N)))
        bias = jnp.pad(bias, ((0, 0), (0, Np - N)))
        if residual is not None:
            residual = jnp.pad(residual, ((0, 0), (0, Np - N)))

    in_specs = [
        pl.BlockSpec((TM, Kp), lambda i, j: (i, 0)),
        pl.BlockSpec((Kp, TN), lambda i, j: (0, j)),
        pl.BlockSpec((1, TN), lambda i, j: (0, j)),
        pl.BlockSpec((1, TN), lambda i, j: (0, j)),
    ]
    args = [x, w, scale, bias]
    if residual is not None:
        in_specs.append(pl.BlockSpec((TM, TN), lambda i, j: (i, j)))
        args.append(residual)
        kernel = functools.partial(_mm_bn_res_kernel, relu=relu)
    else:
        kernel = functools.partial(_mm_bn_kernel, relu=relu)

    out = pl.pallas_call(
        kernel,
        out_shape=jax.ShapeDtypeStruct((Mp, Np), jnp.bfloat16),
        grid_spec=pltpu.PrefetchScalarGridSpec(
            num_scalar_prefetch=0,
            grid=(Mp // TM, Np // TN),
            in_specs=in_specs,
            out_specs=pl.BlockSpec((TM, TN), lambda i, j: (i, j)),
        ),
        compiler_params=pltpu.CompilerParams(
            dimension_semantics=("parallel", "parallel"),
            vmem_limit_bytes=32 * 1024 * 1024),
    )(*args)
    if Mp != M or Np != N:
        out = out[:M, :N]
    return out


def conv_bn(x, p, stride=1, padding=0, relu=True, residual=None):
    """x: NHWC bf16. p: prebuilt conv+BN params (matmul-layout bf16 weight, f32 scale/bias)."""
    N, H, W, Cin = x.shape
    kh, kw = p['kh'], p['kw']

    if kh == 1 and kw == 1:
        xs = x[:, ::stride, ::stride, :] if stride > 1 else x
        Ho, Wo = xs.shape[1], xs.shape[2]
        patches = xs.reshape(N * Ho * Wo, Cin)
    else:
        xp = jnp.pad(x, ((0, 0), (padding, padding), (padding, padding), (0, 0)))
        Ho = (H + 2 * padding - kh) // stride + 1
        Wo = (W + 2 * padding - kw) // stride + 1
        cols = [xp[:, i:i + stride * Ho:stride, j:j + stride * Wo:stride, :]
                for i in range(kh) for j in range(kw)]
        patches = jnp.concatenate(cols, axis=-1).reshape(N * Ho * Wo, kh * kw * Cin)

    Cout = p['scale'].shape[1]
    res = residual.reshape(N * Ho * Wo, Cout) if residual is not None else None
    y = fused_matmul_bn(patches, p['w'], p['scale'], p['bias'], residual=res, relu=relu)
    return y.reshape(N, Ho, Wo, Cout)


def maxpool2d_3x3_s2(x):
    """3x3 / stride 2 / pad 1 max pool (torchvision ResNet maxpool), x: NHWC bf16."""
    N, H, W, C = x.shape
    k, s, pad = 3, 2, 1
    neg = jnp.finfo(x.dtype).min
    xp = jnp.pad(x, ((0, 0), (pad, pad), (pad, pad), (0, 0)), constant_values=neg)
    Ho = (H + 2 * pad - k) // s + 1
    Wo = (W + 2 * pad - k) // s + 1
    taps = [xp[:, i:i + s * Ho:s, j:j + s * Wo:s, :]
            for i in range(k) for j in range(k)]
    stacked = jnp.stack(taps, axis=0).reshape(k * k, N * Ho * Wo * C)

    # Lane-dense layout: fold spatial*channel into rows of 128 lanes, tile over rows.
    LANES = 128
    total = N * Ho * Wo * C
    total_p = _ceil_to(total, LANES)
    if total_p != total:
        stacked = jnp.pad(stacked, ((0, 0), (0, total_p - total)), constant_values=neg)
    R = total_p // LANES
    TR = 256 if R >= 256 else _ceil_to(R, ALIGN)
    Rp = _ceil_to(R, TR)
    s3 = stacked.reshape(k * k, R, LANES)
    if Rp != R:
        s3 = jnp.pad(s3, ((0, 0), (0, Rp - R), (0, 0)), constant_values=neg)

    out = pl.pallas_call(
        _max_reduce_kernel,
        out_shape=jax.ShapeDtypeStruct((Rp, LANES), x.dtype),
        grid_spec=pltpu.PrefetchScalarGridSpec(
            num_scalar_prefetch=0,
            grid=(Rp // TR,),
            in_specs=[pl.BlockSpec((k * k, TR, LANES), lambda i: (0, i, 0))],
            out_specs=pl.BlockSpec((TR, LANES), lambda i: (i, 0)),
        ),
        compiler_params=pltpu.CompilerParams(
            dimension_semantics=("parallel",)),
    )(s3)
    return out.reshape(-1)[:total].reshape(N, Ho, Wo, C)


# ----------------------------------------------------------------------------
# Parameters (deterministic synthetic init; matches torchvision resnet50 shapes).
# Weights are stored already in matmul layout (kh*kw*Cin x Cout), bf16, K padded to 16,
# with BN folded into f32 scale/bias — no per-call transpose/reshape/pad glue.
# ----------------------------------------------------------------------------
def make_conv_bn(key, cout, cin, kh, kw, eps=1e-5):
    k1, k2, k3 = jax.random.split(key, 3)
    std = (2.0 / (cin * kh * kw)) ** 0.5
    w = std * jax.random.normal(k1, (cout, cin, kh, kw), jnp.float32)
    gamma = 1.0 + 0.1 * jax.random.normal(k2, (cout,), jnp.float32)
    beta = 0.1 * jax.random.normal(k3, (cout,), jnp.float32)
    mean = jnp.zeros((cout,), jnp.float32)
    var = jnp.ones((cout,), jnp.float32)
    scale = gamma / jnp.sqrt(var + eps)
    bias = beta - mean * scale
    K = kh * kw * cin
    Kp = _ceil_to(K, ALIGN)
    w_mat = jnp.transpose(w, (2, 3, 1, 0)).reshape(K, cout)
    if Kp != K:
        w_mat = jnp.pad(w_mat, ((0, Kp - K), (0, 0)))
    return {
        'w': w_mat.astype(jnp.bfloat16),
        'scale': scale.reshape(1, cout),
        'bias': bias.reshape(1, cout),
        'kh': kh, 'kw': kw,
    }


def make_bottleneck_params(key, inplanes, planes, stride):
    keys = jax.random.split(key, 4)
    p = {
        'conv1': make_conv_bn(keys[0], planes, inplanes, 1, 1),
        'conv2': make_conv_bn(keys[1], planes, planes, 3, 3),
        'conv3': make_conv_bn(keys[2], planes * 4, planes, 1, 1),
        'stride': stride,
    }
    if stride != 1 or inplanes != planes * 4:
        p['down'] = make_conv_bn(keys[3], planes * 4, inplanes, 1, 1)
    return p


def make_resnet50_params(key):
    keys = iter(jax.random.split(key, 64))
    params = {'conv1': make_conv_bn(next(keys), 64, 3, 7, 7)}
    layer_cfg = [(64, 3, 1), (128, 4, 2), (256, 6, 2), (512, 3, 2)]  # resnet50
    inplanes = 64
    layers = []
    for planes, nblocks, stride in layer_cfg:
        blocks = []
        for b in range(nblocks):
            s = stride if b == 0 else 1
            blocks.append(make_bottleneck_params(next(keys), inplanes, planes, s))
            inplanes = planes * 4
        layers.append(blocks)
    params['layers'] = layers
    return params


# ----------------------------------------------------------------------------
# Forward pass (mirrors ResNet.forward: conv1/bn1/relu/maxpool, layer1..layer4)
# ----------------------------------------------------------------------------
def bottleneck_forward(x, p):
    identity = x
    out = conv_bn(x, p['conv1'], stride=1, padding=0, relu=True)
    out = conv_bn(out, p['conv2'], stride=p['stride'], padding=1, relu=True)
    if 'down' in p:
        identity = conv_bn(x, p['down'], stride=p['stride'], padding=0, relu=False)
    # conv3 + bn3 + residual add + final ReLU fused in one Pallas kernel
    out = conv_bn(out, p['conv3'], stride=1, padding=0, relu=True, residual=identity)
    return out


def resnet_forward(x_nchw, params):
    x = jnp.transpose(x_nchw, (0, 2, 3, 1)).astype(jnp.bfloat16)  # NCHW -> NHWC, bf16
    x = conv_bn(x, params['conv1'], stride=2, padding=3, relu=True)
    x = maxpool2d_3x3_s2(x)
    for blocks in params['layers']:  # layer1..layer4 (none cropped with default args)
        for p in blocks:
            x = bottleneck_forward(x, p)
    return jnp.transpose(x, (0, 3, 1, 2)).astype(jnp.float32)  # NHWC -> NCHW


if __name__ == "__main__":
    key = jax.random.PRNGKey(0)
    pkey, xkey = jax.random.split(key)
    params = make_resnet50_params(pkey)
    # Small-but-consistent input: batch=2, 3 channels, 64x64 spatial (NCHW).
    x = jax.random.normal(xkey, (2, 3, 64, 64), jnp.float32)
    out = jax.block_until_ready(resnet_forward(x, params))
    assert out.shape == (2, 2048, 2, 2), out.shape  # out_channels == 2048
    assert bool(jnp.all(jnp.isfinite(out)))
    print("KERNEL_OK")
</pallas_src>

<mosaic_0001>
module attributes {stable_mosaic.version = 11 : i64} {
  func.func @_mm_bn_kernel(%arg0: i32, %arg1: i32, %arg2: memref<256x160xbf16, #tpu.memory_space<vmem>>, %arg3: memref<160x64xbf16, #tpu.memory_space<vmem>>, %arg4: memref<1x64xf32, #tpu.memory_space<vmem>>, %arg5: memref<1x64xf32, #tpu.memory_space<vmem>>, %arg6: memref<256x64xbf16, #tpu.memory_space<vmem>>) attributes {dimension_semantics = [#tpu.dimension_semantics<parallel>, #tpu.dimension_semantics<parallel>], iteration_bounds = array<i64: 8, 1>, scalar_prefetch = 0 : i64, scratch_operands = 0 : i64, tpu.core_type = #tpu.core_type<tc>, window_params = [{transform_indices = @transform_0, window_bounds = array<i64: 256, 160>}, {transform_indices = @transform_1, window_bounds = array<i64: 160, 64>}, {transform_indices = @transform_2, window_bounds = array<i64: 1, 64>}, {transform_indices = @transform_3, window_bounds = array<i64: 1, 64>}, {transform_indices = @transform_4, window_bounds = array<i64: 256, 64>}]} {
    %c0 = arith.constant 0 : index
    %c0_0 = arith.constant 0 : index
    %0 = vector.load %arg2[%c0, %c0_0] : memref<256x160xbf16, #tpu.memory_space<vmem>>, vector<256x160xbf16>
    %c0_1 = arith.constant 0 : index
    %c0_2 = arith.constant 0 : index
    %1 = vector.load %arg3[%c0_1, %c0_2] : memref<160x64xbf16, #tpu.memory_space<vmem>>, vector<160x64xbf16>
    %cst = arith.constant dense<0.000000e+00> : vector<256x64xf32>
    %2 = tpu.matmul %0, %1, %cst {dimension_numbers = #tpu.dot_dimension_numbers<[1], [0], [0], [1], [0, 0, 1, 1], [], []>} : vector<256x160xbf16>, vector<160x64xbf16>, vector<256x64xf32> -> vector<256x64xf32>
    %c0_3 = arith.constant 0 : index
    %c0_4 = arith.constant 0 : index
    %3 = vector.load %arg4[%c0_3, %c0_4] : memref<1x64xf32, #tpu.memory_space<vmem>>, vector<1x64xf32>
    %4 = vector.broadcast %3 : vector<1x64xf32> to vector<256x64xf32>
    %5 = arith.mulf %2, %4 : vector<256x64xf32>
    %c0_5 = arith.constant 0 : index
    %c0_6 = arith.constant 0 : index
    %6 = vector.load %arg5[%c0_5, %c0_6] : memref<1x64xf32, #tpu.memory_space<vmem>>, vector<1x64xf32>
    %7 = vector.broadcast %6 : vector<1x64xf32> to vector<256x64xf32>
    %8 = arith.addf %5, %7 : vector<256x64xf32>
    %cst_7 = arith.constant 0.000000e+00 : f32
    %9 = vector.broadcast %cst_7 : f32 to vector<256x64xf32>
    %10 = arith.maximumf %8, %9 : vector<256x64xf32>
    %11 = arith.truncf %10 : vector<256x64xf32> to vector<256x64xbf16>
    %c0_8 = arith.constant 0 : index
    %c0_9 = arith.constant 0 : index
    %12 = vector.load %arg6[%c0_8, %c0_9] : memref<256x64xbf16, #tpu.memory_space<vmem>>, vector<256x64xbf16>
    tpu.vector_store %arg6[%c0_8, %c0_9], %11 {strides = array<i32>} : memref<256x64xbf16, #tpu.memory_space<vmem>>, vector<256x64xbf16>,
    return
  }
  func.func @transform_0(%arg0: i32, %arg1: i32) -> (i32, i32) {
    %c0_i32 = arith.constant 0 : i32
    %c0_i32_0 = arith.constant 0 : i32
    return %arg0, %c0_i32 : i32, i32
  }
  func.func @transform_1(%arg0: i32, %arg1: i32) -> (i32, i32) {
    %c0_i32 = arith.constant 0 : i32
    %c0_i32_0 = arith.constant 0 : i32
    return %c0_i32, %arg1 : i32, i32
  }
  func.func @transform_2(%arg0: i32, %arg1: i32) -> (i32, i32) {
    %c0_i32 = arith.constant 0 : i32
    %c0_i32_0 = arith.constant 0 : i32
    return %c0_i32, %arg1 : i32, i32
  }
  func.func @transform_3(%arg0: i32, %arg1: i32) -> (i32, i32) {
    %c0_i32 = arith.constant 0 : i32
    %c0_i32_0 = arith.constant 0 : i32
    return %c0_i32, %arg1 : i32, i32
  }
  func.func @transform_4(%arg0: i32, %arg1: i32) -> (i32, i32) {
    %c0_i32 = arith.constant 0 : i32
    return %arg0, %arg1 : i32, i32
  }
}

</mosaic_0001>

<llo_original>
// kernel: tpu_custom_call.1
$region0: #{tpu_custom_call.1}
  #allocation0 [shape = 'u32[]', space=smem, size = 0x4, offset = 0x4, fixed_abs, tag = 'smem constant byte address 0x4 - core index']
  #allocation1 [shape = 'u32[144,128]{1,0:T(1,128)}', space=vmem, size = 0x12000, scoped, tag = 'internal scratch']
  %s0 = inlined_call_operand.vmem [shape: bf16[2048,160], index: 0, kind: input, shape index: {}]
  %s1 = inlined_call_operand.vmem [shape: bf16[160,64], index: 1, kind: input, shape index: {}]
  %s2 = inlined_call_operand.vmem [shape: f32[1,64], index: 2, kind: input, shape index: {}]
  %s3 = inlined_call_operand.vmem [shape: f32[1,64], index: 3, kind: input, shape index: {}]
  %s4 = inlined_call_operand.vmem [shape: bf16[2048,64], index: 4, kind: output, shape index: {}]
  %s5 = sld [smem:[#allocation0]]
  $region49: #{tpu_custom_call.1} parent=0
    _
  %s7 = ssub.s32 1, %s5
  %s8 = scalar_select 0, %s7, %s5
  loop: start=0, step=1, limit=10
  $region2: #{tpu_custom_call.1} parent=0 // loop_pre_header
    _
  $region3: #{tpu_custom_call.1} parent=0 // loop_header
    %s10 = sphi 0, %s14
    %p11 = scmp.ge.s32.totalorder %s10, 10
    %s17 = sphi 0, %s29
    %s18 = sphi 0, %s25
    %s19 = sphi 0, %s17
    %s20 = sphi 0, %s18
    %s21 = sphi 0, %s19
    %s22 = sphi 0, %s20
    %s32 = sphi 0, %s34
    %s35 = sphi 0, %s32
    %s36 = sphi 0, %s35
    %s52 = sphi 0, %s36
    %s58 = sphi 0, %s60
    %s61 = sphi 0, %s58
    %s62 = sphi 0, %s61
    %s78 = sphi 0, %s62
    %s84 = sphi 0, %s86
    %s87 = sphi 0, %s84
    %s88 = sphi 0, %s87
    %s104 = sphi 0, %s88
    %s110 = sphi 0, %s112
    %s113 = sphi 0, %s110
    %s114 = sphi 0, %s113
    %s130 = sphi 0, %s114
    %s138 = sphi 0, %s140
    %s141 = sphi 0, %s138
    %s142 = sphi 0, %s141
    %s158 = sphi 0, %s142
  $region4: #{tpu_custom_call.1} parent=0 // loop_header_branch
    %13 = sbr.rel (%p11) target = $region8
  $region5: #{tpu_custom_call.1} parent=0 // loop_body
    %s15 = ssub.s32 %s10, 1
    %s16 = ssub.s32 %s10, 2
    %s23 = sadd.s32 1, %s18
    %p24 = scmp.ge.s32.totalorder %s23, 1
    %s25 = scalar_select %p24, 0, %s23
    %s26 = sadd.s32 1, %s17
    %s27 = scalar_select %p24, %s26, %s17
    %p28 = scmp.ge.s32.totalorder %s27, 8
    %s29 = scalar_select %p28, 0, %s27
    %s30 = ssub.s32 %s17, %s29
    %p31 = scmp.eq.s32.totalorder %s30, 0
    %s33 = sadd.s32 %s32, 1
    %s34 = scalar_select %p31, %s32, %s33
    %p37 = pneg %p31
    %p38 = scmp.eq.s32.totalorder %s10, 7
    %p39 = por %p37, %p38
    %p40 = scmp.ne.s32.totalorder %s32, %s35
    %p41 = scmp.eq.s32.totalorder %s10, 0
    %p42 = por %p40, %p41
    %p43 = scmp.ne.s32.totalorder %s32, %s35
    %p44 = scmp.eq.s32.totalorder %s15, 7
    %p45 = por %p43, %p44
    %p46 = scmp.ne.s32.totalorder %s35, %s36
    %p47 = scmp.eq.s32.totalorder %s15, 0
    %p48 = por %p46, %p47
    %p49 = scmp.ne.s32.totalorder %s35, %s36
    %p50 = scmp.eq.s32.totalorder %s16, 7
    %p51 = por %p49, %p50
    %p53 = scmp.ne.s32.totalorder %s36, %s52
    %p54 = scmp.eq.s32.totalorder %s16, 0
    %p55 = por %p53, %p54
    %s56 = ssub.s32 %s18, %s25
    %p57 = scmp.eq.s32.totalorder %s56, 0
    %s59 = sadd.s32 %s58, 1
    %s60 = scalar_select %p57, %s58, %s59
    %p63 = pneg %p57
    %p64 = scmp.eq.s32.totalorder %s10, 7
    %p65 = por %p63, %p64
    %p66 = scmp.ne.s32.totalorder %s58, %s61
    %p67 = scmp.eq.s32.totalorder %s10, 0
    %p68 = por %p66, %p67
    %p69 = scmp.ne.s32.totalorder %s58, %s61
    %p70 = scmp.eq.s32.totalorder %s15, 7
    %p71 = por %p69, %p70
    %p72 = scmp.ne.s32.totalorder %s61, %s62
    %p73 = scmp.eq.s32.totalorder %s15, 0
    %p74 = por %p72, %p73
    %p75 = scmp.ne.s32.totalorder %s61, %s62
    %p76 = scmp.eq.s32.totalorder %s16, 7
    %p77 = por %p75, %p76
    %p79 = scmp.ne.s32.totalorder %s62, %s78
    %p80 = scmp.eq.s32.totalorder %s16, 0
    %p81 = por %p79, %p80
    %s82 = ssub.s32 %s18, %s25
    %p83 = scmp.eq.s32.totalorder %s82, 0
    %s85 = sadd.s32 %s84, 1
    %s86 = scalar_select %p83, %s84, %s85
    %p89 = pneg %p83
    %p90 = scmp.eq.s32.totalorder %s10, 7
    %p91 = por %p89, %p90
    %p92 = scmp.ne.s32.totalorder %s84, %s87
    %p93 = scmp.eq.s32.totalorder %s10, 0
    %p94 = por %p92, %p93
    %p95 = scmp.ne.s32.totalorder %s84, %s87
    %p96 = scmp.eq.s32.totalorder %s15, 7
    %p97 = por %p95, %p96
    %p98 = scmp.ne.s32.totalorder %s87, %s88
    %p99 = scmp.eq.s32.totalorder %s15, 0
    %p100 = por %p98, %p99
    %p101 = scmp.ne.s32.totalorder %s87, %s88
    %p102 = scmp.eq.s32.totalorder %s16, 7
    %p103 = por %p101, %p102
    %p105 = scmp.ne.s32.totalorder %s88, %s104
    %p106 = scmp.eq.s32.totalorder %s16, 0
    %p107 = por %p105, %p106
    %s108 = ssub.s32 %s18, %s25
    %p109 = scmp.eq.s32.totalorder %s108, 0
    %s111 = sadd.s32 %s110, 1
    %s112 = scalar_select %p109, %s110, %s111
    %p115 = pneg %p109
    %p116 = scmp.eq.s32.totalorder %s10, 7
    %p117 = por %p115, %p116
    %p118 = scmp.ne.s32.totalorder %s110, %s113
    %p119 = scmp.eq.s32.totalorder %s10, 0
    %p120 = por %p118, %p119
    %p121 = scmp.ne.s32.totalorder %s110, %s113
    %p122 = scmp.eq.s32.totalorder %s15, 7
    %p123 = por %p121, %p122
    %p124 = scmp.ne.s32.totalorder %s113, %s114
    %p125 = scmp.eq.s32.totalorder %s15, 0
    %p126 = por %p124, %p125
    %p127 = scmp.ne.s32.totalorder %s113, %s114
    %p128 = scmp.eq.s32.totalorder %s16, 7
    %p129 = por %p127, %p128
    %p131 = scmp.ne.s32.totalorder %s114, %s130
    %p132 = scmp.eq.s32.totalorder %s16, 0
    %p133 = por %p131, %p132
    %s134 = ssub.s32 %s17, %s29
    %s135 = ssub.s32 %s18, %s25
    %s136 = sor.u32 %s134, %s135
    %p137 = scmp.eq.s32.totalorder %s136, 0
    %s139 = sadd.s32 %s138, 1
    %s140 = scalar_select %p137, %s138, %s139
    %p143 = pneg %p137
    %p144 = scmp.eq.s32.totalorder %s10, 7
    %p145 = por %p143, %p144
    %p146 = scmp.ne.s32.totalorder %s138, %s141
    %p147 = scmp.eq.s32.totalorder %s10, 0
    %p148 = por %p146, %p147
    %p149 = scmp.ne.s32.totalorder %s138, %s141
    %p150 = scmp.eq.s32.totalorder %s15, 7
    %p151 = por %p149, %p150
    %p152 = scmp.ne.s32.totalorder %s141, %s142
    %p153 = scmp.eq.s32.totalorder %s15, 0
    %p154 = por %p152, %p153
    %p155 = scmp.ne.s32.totalorder %s141, %s142
    %p156 = scmp.eq.s32.totalorder %s16, 7
    %p157 = por %p155, %p156
    %p159 = scmp.ne.s32.totalorder %s142, %s158
    %p160 = scmp.eq.s32.totalorder %s16, 0
    %p161 = por %p159, %p160
    %p162 = scmp.le.s32.totalorder 1, %s10
    %p163 = scmp.lt.s32.totalorder %s10, 9
    %p164 = pnand %p162, %p163
    %p165 = pneg %p164
    // Predicated region
    $region9: #{tpu_custom_call.1} parent=5 // pred_check
      _
    $region10: #{tpu_custom_call.1} parent=5 // pred_check_branch
      %167 = sbr.rel (%p164) target = $region12
    $region11: #{tpu_custom_call.1} parent=5 // pred_region
      %s168 = ssub.s32 %s10, 1
      // Predicated region
      $region13: #{tpu_custom_call.1} parent=11 // pred_check
        %p169 = pneg %p74
      $region14: #{tpu_custom_call.1} parent=11 // pred_check_branch
        %171 = sbr.rel (%p169) target = $region16
      $region15: #{tpu_custom_call.1} parent=11 // pred_region
        %p172 = scmp.lt.s32.totalorder %s20, 0
        %s173 = scalar_select %p172, %s20, 0
        %s174 = smul.addr %s173, 4
        %s175 = scalar_lea.vmem %s1, %s174
      $region16: #{tpu_custom_call.1} parent=11 // pred_fallthru
        _
      // Predicated region
      $region17: #{tpu_custom_call.1} parent=11 // pred_check
        %p176 = pneg %p100
      $region18: #{tpu_custom_call.1} parent=11 // pred_check_branch
        %178 = sbr.rel (%p176) target = $region20
      $region19: #{tpu_custom_call.1} parent=11 // pred_region
        %p179 = scmp.lt.s32.totalorder %s20, 0
        %s180 = scalar_select %p179, %s20, 0
        %s181 = scalar_lea.vmem %s2, %s180
      $region20: #{tpu_custom_call.1} parent=11 // pred_fallthru
        _
      // Predicated region
      $region21: #{tpu_custom_call.1} parent=11 // pred_check
        %p182 = pneg %p126
      $region22: #{tpu_custom_call.1} parent=11 // pred_check_branch
        %184 = sbr.rel (%p182) target = $region24
      $region23: #{tpu_custom_call.1} parent=11 // pred_region
        %p185 = scmp.lt.s32.totalorder %s20, 0
        %s186 = scalar_select %p185, %s20, 0
        %s187 = scalar_lea.vmem %s3, %s186
      $region24: #{tpu_custom_call.1} parent=11 // pred_fallthru
        _
    $region12: #{tpu_custom_call.1} parent=5 // pred_fallthru
      _
    %p188 = scmp.lt.s32.totalorder %s10, 8
    // Predicated region
    $region25: #{tpu_custom_call.1} parent=5 // pred_check
      %p189 = pneg %p188
    $region26: #{tpu_custom_call.1} parent=5 // pred_check_branch
      %191 = sbr.rel (%p189) target = $region28
    $region27: #{tpu_custom_call.1} parent=5 // pred_region
      // Predicated region
      $region29: #{tpu_custom_call.1} parent=27 // pred_check
        %p192 = pneg %p42
      $region30: #{tpu_custom_call.1} parent=27 // pred_check_branch
        %194 = sbr.rel (%p192) target = $region32
      $region31: #{tpu_custom_call.1} parent=27 // pred_region
        %s195 = smul.u32 32, %s17
        %p196 = scmp.lt.s32.totalorder %s195, 255
        %s197 = scalar_select %p196, %s195, 255
        %s198 = smul.addr %s197, 2
        %s199 = smul.addr %s198, 4
        %s200 = scalar_lea.vmem %s0, %s199
        %s201 = smul.u32 32, %s17
      $region32: #{tpu_custom_call.1} parent=27 // pred_fallthru
        _
    $region28: #{tpu_custom_call.1} parent=5 // pred_fallthru
      _
    %p202 = scmp.le.s32.totalorder 1, %s10
    %p203 = scmp.lt.s32.totalorder %s10, 9
    %p204 = pnand %p202, %p203
    %p205 = pneg %p204
    // Predicated region
    $region33: #{tpu_custom_call.1} parent=5 // pred_check
      _
    $region34: #{tpu_custom_call.1} parent=5 // pred_check_branch
      %207 = sbr.rel (%p204) target = $region36
    $region35: #{tpu_custom_call.1} parent=5 // pred_region
      %s208 = ssub.s32 %s10, 1
      %s209 = smul.u32 32, %s19
      %p210 = scmp.lt.s32.totalorder %s209, 255
      %s211 = scalar_select %p210, %s209, 255
      %s212 = smul.addr %s211, 2
      %s213 = smul.addr %s212, 4
      %s214 = scalar_lea.vmem %s0, %s213
      %p215 = pneg %p48
      %p216 = pneg %p45
      %p217 = scmp.lt.s32.totalorder %s20, 0
      %s218 = scalar_select %p217, %s20, 0
      %s219 = smul.addr %s218, 4
      %s220 = scalar_lea.vmem %s1, %s219
      %p221 = pneg %p74
      %p222 = pneg %p71
      %p223 = scmp.lt.s32.totalorder %s20, 0
      %s224 = scalar_select %p223, %s20, 0
      %s225 = scalar_lea.vmem %s2, %s224
      %p226 = pneg %p100
      %p227 = pneg %p97
      %p228 = scmp.lt.s32.totalorder %s20, 0
      %s229 = scalar_select %p228, %s20, 0
      %s230 = scalar_lea.vmem %s3, %s229
      %p231 = pneg %p126
      %p232 = pneg %p123
      %p233 = pneg %p154
      %p234 = pneg %p151
      %s235 = smul.u32 32, %s19
      %p236 = scmp.lt.s32.totalorder %s235, 255
      %s237 = scalar_select %p236, %s235, 255
      %p238 = scmp.lt.s32.totalorder %s20, 0
      %s239 = scalar_select %p238, %s20, 0
      %s240 = sadd.s32 %s239, %s237
      %s241 = smul.addr %s240, 4
      %s242 = scalar_lea.vmem %s4, %s241
      %s243 = smul.u32 32, %s19
      %p244 = scmp.lt.s32.totalorder %s243, 255
      %s245 = scalar_select %p244, %s243, 255
      %s246 = smul.addr %s245, 2
      %s247 = smul.addr %s246, 4
      %s248 = scalar_lea.vmem %s0, %s247
      %s249 = smul.u32 32, %s19
      %p250 = scmp.lt.s32.totalorder %s20, 0
      %s251 = scalar_select %p250, %s20, 0
      %s252 = smul.addr %s251, 4
      %s253 = scalar_lea.vmem %s1, %s252
      %p254 = scmp.lt.s32.totalorder %s20, 0
      %s255 = scalar_select %p254, %s20, 0
      %s256 = scalar_lea.vmem %s2, %s255
      %p257 = scmp.lt.s32.totalorder %s20, 0
      %s258 = scalar_select %p257, %s20, 0
      %s259 = scalar_lea.vmem %s3, %s258
      %s260 = smul.u32 32, %s19
      %p261 = scmp.lt.s32.totalorder %s260, 255
      %s262 = scalar_select %p261, %s260, 255
      %p263 = scmp.lt.s32.totalorder %s20, 0
      %s264 = scalar_select %p263, %s20, 0
      %s265 = sadd.s32 %s264, %s262
      %s266 = smul.addr %s265, 4
      %s267 = scalar_lea.vmem %s4, %s266
      %s268 = smul.u32 32, %s19
      %v270 = vld [vmem:[%s248] sm:$0xff]
      %v271 = vld [vmem:[%s248 + $0x8] sm:$0xff]
      %v272 = vld [vmem:[%s248 + $0x10] sm:$0xff]
      %v273 = vld [vmem:[%s248 + $0x18] sm:$0xff]
      %v274 = vld [vmem:[%s248 + $0x20] sm:$0xff]
      %v275 = vld [vmem:[%s248 + $0x28] sm:$0xff]
      %v276 = vld [vmem:[%s248 + $0x30] sm:$0xff]
      %v277 = vld [vmem:[%s248 + $0x38] sm:$0xff]
      %v278 = vld [vmem:[%s248 + $0x40] sm:$0xff]
      %v279 = vld [vmem:[%s248 + $0x48] sm:$0xff]
      %v280 = vld [vmem:[%s248 + $0x50] sm:$0xff]
      %v281 = vld [vmem:[%s248 + $0x58] sm:$0xff]
      %v282 = vld [vmem:[%s248 + $0x60] sm:$0xff]
      %v283 = vld [vmem:[%s248 + $0x68] sm:$0xff]
      %v284 = vld [vmem:[%s248 + $0x70] sm:$0xff]
      %v285 = vld [vmem:[%s248 + $0x78] sm:$0xff]
      %v286 = vld [vmem:[%s248 + $0x80] sm:$0xff]
      %v287 = vld [vmem:[%s248 + $0x88] sm:$0xff]
      %v288 = vld [vmem:[%s248 + $0x90] sm:$0xff]
      %v289 = vld [vmem:[%s248 + $0x98] sm:$0xff]
      %v290 = vld [vmem:[%s248 + $0xa0] sm:$0xff]
      %v291 = vld [vmem:[%s248 + $0xa8] sm:$0xff]
      %v292 = vld [vmem:[%s248 + $0xb0] sm:$0xff]
      %v293 = vld [vmem:[%s248 + $0xb8] sm:$0xff]
      %v294 = vld [vmem:[%s248 + $0xc0] sm:$0xff]
      %v295 = vld [vmem:[%s248 + $0xc8] sm:$0xff]
      %v296 = vld [vmem:[%s248 + $0xd0] sm:$0xff]
      %v297 = vld [vmem:[%s248 + $0xd8] sm:$0xff]
      %v298 = vld [vmem:[%s248 + $0xe0] sm:$0xff]
      %v299 = vld [vmem:[%s248 + $0xe8] sm:$0xff]
      %v300 = vld [vmem:[%s248 + $0xf0] sm:$0xff]
      %v301 = vld [vmem:[%s248 + $0xf8] sm:$0xff]
      %v302 = vld [vmem:[%s253] sm:$0xf]
      %v303 = vld [vmem:[%s253 + $0x4] sm:$0xf]
      %v304 = vld [vmem:[%s253 + $0x8] sm:$0xf]
      %v305 = vld [vmem:[%s253 + $0xc] sm:$0xf]
      %v306 = vld [vmem:[%s253 + $0x10] sm:$0xf]
      %v307 = vld [vmem:[%s253 + $0x14] sm:$0xf]
      %v308 = vld [vmem:[%s253 + $0x18] sm:$0xf]
      %v309 = vld [vmem:[%s253 + $0x1c] sm:$0xf]
      %v310 = vld [vmem:[%s253 + $0x20] sm:$0xf]
      %v311 = vld [vmem:[%s253 + $0x24] sm:$0xf]
      %v312 = vld [vmem:[%s253 + $0x28] sm:$0xf]
      %v313 = vld [vmem:[%s253 + $0x2c] sm:$0xf]
      %v314 = vld [vmem:[%s253 + $0x30] sm:$0xf]
      %v315 = vld [vmem:[%s253 + $0x34] sm:$0xf]
      %v316 = vld [vmem:[%s253 + $0x38] sm:$0xf]
      %v317 = vld [vmem:[%s253 + $0x3c] sm:$0xf]
      %v318 = vld [vmem:[%s253 + $0x40] sm:$0xf]
      %v319 = vld [vmem:[%s253 + $0x44] sm:$0xf]
      %v320 = vld [vmem:[%s253 + $0x48] sm:$0xf]
      %v321 = vld [vmem:[%s253 + $0x4c] sm:$0xf]
      %v354 = vunpack.c.l.b16 %v270
      %v355 = vunpack.c.h.b16 %v270
      %v356 = vunpack.c.l.b16 %v271
      %v357 = vunpack.c.h.b16 %v271
      %v358 = vunpack.c.l.b16 %v272
      %v359 = vunpack.c.h.b16 %v272
      %v360 = vunpack.c.l.b16 %v273
      %v361 = vunpack.c.h.b16 %v273
      %v362 = vunpack.c.l.b16 %v274
      %v363 = vunpack.c.h.b16 %v274
      %v364 = vunpack.c.l.b16 %v275
      %v365 = vunpack.c.h.b16 %v275
      %v366 = vunpack.c.l.b16 %v276
      %v367 = vunpack.c.h.b16 %v276
      %v368 = vunpack.c.l.b16 %v277
      %v369 = vunpack.c.h.b16 %v277
      %v370 = vunpack.c.l.b16 %v278
      %v371 = vunpack.c.h.b16 %v278
      %v372 = vunpack.c.l.b16 %v279
      %v373 = vunpack.c.h.b16 %v279
      %v374 = vunpack.c.l.b16 %v280
      %v375 = vunpack.c.h.b16 %v280
      %v376 = vunpack.c.l.b16 %v281
      %v377 = vunpack.c.h.b16 %v281
      %v378 = vunpack.c.l.b16 %v282
      %v379 = vunpack.c.h.b16 %v282
      %v380 = vunpack.c.l.b16 %v283
      %v381 = vunpack.c.h.b16 %v283
      %v382 = vunpack.c.l.b16 %v284
      %v383 = vunpack.c.h.b16 %v284
      %v384 = vunpack.c.l.b16 %v285
      %v385 = vunpack.c.h.b16 %v285
      %v386 = vunpack.c.l.b16 %v286
      %v387 = vunpack.c.h.b16 %v286
      %v388 = vunpack.c.l.b16 %v287
      %v389 = vunpack.c.h.b16 %v287
      %v390 = vunpack.c.l.b16 %v288
      %v391 = vunpack.c.h.b16 %v288
      %v392 = vunpack.c.l.b16 %v289
      %v393 = vunpack.c.h.b16 %v289
      %v394 = vunpack.c.l.b16 %v290
      %v395 = vunpack.c.h.b16 %v290
      %v396 = vunpack.c.l.b16 %v291
      %v397 = vunpack.c.h.b16 %v291
      %v398 = vunpack.c.l.b16 %v292
      %v399 = vunpack.c.h.b16 %v292
      %v400 = vunpack.c.l.b16 %v293
      %v401 = vunpack.c.h.b16 %v293
      %v402 = vunpack.c.l.b16 %v294
      %v403 = vunpack.c.h.b16 %v294
      %v404 = vunpack.c.l.b16 %v295
      %v405 = vunpack.c.h.b16 %v295
      %v406 = vunpack.c.l.b16 %v296
      %v407 = vunpack.c.h.b16 %v296
      %v408 = vunpack.c.l.b16 %v297
      %v409 = vunpack.c.h.b16 %v297
      %v410 = vunpack.c.l.b16 %v298
      %v411 = vunpack.c.h.b16 %v298
      %v412 = vunpack.c.l.b16 %v299
      %v413 = vunpack.c.h.b16 %v299
      %v414 = vunpack.c.l.b16 %v300
      %v415 = vunpack.c.h.b16 %v300
      %v416 = vunpack.c.l.b16 %v301
      %v417 = vunpack.c.h.b16 %v301
      %v418 = vpack.c.b16 %v356, %v354
      %v419 = vpack.c.b16 %v357, %v355
      %v420 = vpack.c.b16 %v360, %v358
      %v421 = vpack.c.b16 %v361, %v359
      %v422 = vpack.c.b16 %v364, %v362
      %v423 = vpack.c.b16 %v365, %v363
      %v424 = vpack.c.b16 %v368, %v366
      %v425 = vpack.c.b16 %v369, %v367
      %v426 = vpack.c.b16 %v372, %v370
      %v427 = vpack.c.b16 %v373, %v371
      %v428 = vpack.c.b16 %v376, %v374
      %v429 = vpack.c.b16 %v377, %v375
      %v430 = vpack.c.b16 %v380, %v378
      %v431 = vpack.c.b16 %v381, %v379
      %v432 = vpack.c.b16 %v384, %v382
      %v433 = vpack.c.b16 %v385, %v383
      %v434 = vpack.c.b16 %v388, %v386
      %v435 = vpack.c.b16 %v389, %v387
      %v436 = vpack.c.b16 %v392, %v390
      %v437 = vpack.c.b16 %v393, %v391
      %v438 = vpack.c.b16 %v396, %v394
      %v439 = vpack.c.b16 %v397, %v395
      %v440 = vpack.c.b16 %v400, %v398
      %v441 = vpack.c.b16 %v401, %v399
      %v442 = vpack.c.b16 %v404, %v402
      %v443 = vpack.c.b16 %v405, %v403
      %v444 = vpack.c.b16 %v408, %v406
      %v445 = vpack.c.b16 %v409, %v407
      %v446 = vpack.c.b16 %v412, %v410
      %v447 = vpack.c.b16 %v413, %v411
      %v448 = vpack.c.b16 %v416, %v414
      %v449 = vpack.c.b16 %v417, %v415
      %v486 = vunpack.c.l.b16 %v302
      %v487 = vunpack.c.l.b16 %v303
      %v488 = vunpack.c.l.b16 %v304
      %v489 = vunpack.c.l.b16 %v305
      %v490 = vunpack.c.l.b16 %v306
      %v491 = vunpack.c.l.b16 %v307
      %v492 = vunpack.c.l.b16 %v308
      %v493 = vunpack.c.l.b16 %v309
      %v494 = vunpack.c.l.b16 %v310
      %v495 = vunpack.c.l.b16 %v311
      %v496 = vunpack.c.l.b16 %v312
      %v497 = vunpack.c.l.b16 %v313
      %v498 = vunpack.c.l.b16 %v314
      %v499 = vunpack.c.l.b16 %v315
      %v500 = vunpack.c.l.b16 %v316
      %v501 = vunpack.c.l.b16 %v317
      %v502 = vunpack.c.l.b16 %v318
      %v503 = vunpack.c.l.b16 %v319
      %v504 = vunpack.c.l.b16 %v320
      %v505 = vunpack.c.l.b16 %v321
      %v506 = vpack.c.b16 %v487, %v486
      %v507 = vpack.c.b16 %v489, %v488
      %v508 = vpack.c.b16 %v491, %v490
      %v509 = vpack.c.b16 %v493, %v492
      %v510 = vpack.c.b16 %v495, %v494
      %v511 = vpack.c.b16 %v497, %v496
      %v512 = vpack.c.b16 %v499, %v498
      %v513 = vpack.c.b16 %v501, %v500
      %v514 = vpack.c.b16 %v503, %v502
      %v515 = vpack.c.b16 %v505, %v504
      %vm526 = vcmask 261120
      %v528 = vsel %vm526, %v419, 0
      %v531 = vsel %vm526, %v421, 0
      %v534 = vsel %vm526, %v423, 0
      %v537 = vsel %vm526, %v425, 0
      %v540 = vsel %vm526, %v427, 0
      %v543 = vsel %vm526, %v429, 0
      %v546 = vsel %vm526, %v431, 0
      %v549 = vsel %vm526, %v433, 0
      %v552 = vsel %vm526, %v435, 0
      %v555 = vsel %vm526, %v437, 0
      %v558 = vsel %vm526, %v439, 0
      %v561 = vsel %vm526, %v441, 0
      %v564 = vsel %vm526, %v443, 0
      %v567 = vsel %vm526, %v445, 0
      %v570 = vsel %vm526, %v447, 0
      %v573 = vsel %vm526, %v449, 0
      %575 = vmatprep.subr.bf16.mxu0 0
      %576 = vmatpush1.bf16.msra.mxu0 %v513
      %577 = vmatprep.subr.bf16.mxu0 0
      %578 = vmatpush1.bf16.msra.mxu0 %v512
      %579 = vmatprep.subr.bf16.mxu0 0
      %580 = vmatpush1.bf16.msra.mxu0 %v511
      %581 = vmatprep.subr.bf16.mxu0 0
      %582 = vmatpush1.bf16.msra.mxu0 %v510
      %583 = vmatprep.subr.bf16.mxu0 0
      %584 = vmatpush1.bf16.msra.mxu0 %v509
      %585 = vmatprep.subr.bf16.mxu0 0
      %586 = vmatpush1.bf16.msra.mxu0 %v508
      %587 = vmatprep.subr.bf16.mxu0 0
      %588 = vmatpush1.bf16.msra.mxu0 %v507
      %589 = vmatprep.subr.bf16.mxu0 0
      %590 = vmatpush1.bf16.msra.mxu0 %v506
      %591 = vmatprep.subr.bf16.mxu0 0
      %592 = vmatpush2.bf16.msra.mxu0 0
      %593 = vmatprep.subr.bf16.mxu0 0
      %594 = vmatpush2.bf16.msra.mxu0 0
      %595 = vmatprep.subr.bf16.mxu0 0
      %596 = vmatpush2.bf16.msra.mxu0 0
      %597 = vmatprep.subr.bf16.mxu0 0
      %598 = vmatpush2.bf16.msra.mxu0 0
      %599 = vmatprep.subr.bf16.mxu0 0
      %600 = vmatpush2.bf16.msra.mxu0 0
      %601 = vmatprep.subr.bf16.mxu0 0
      %602 = vmatpush2.bf16.msra.mxu0 0
      %603 = vmatprep.subr.bf16.mxu0 0
      %604 = vmatpush2.bf16.msra.mxu0 %v515
      %605 = vmatprep.subr.bf16.mxu0 0
      %606 = vmatpush2.bf16.msra.mxu0 %v514
      %607 = vmatprep.mubr.bf16.mxu0 %v528
      %608 = vmatmul.mubr.bf16.gmra.mxu0 %v418
      %v609 = vpop.f32.mrf.mxu0
      %v610 = vadd.f32 0.0, %v609
      %v611 = vpop.f32.mrf.mxu0
      %v612 = vpop.f32.mrf.mxu0
      %v613 = vadd.f32 0.0, %v612
      %v614 = vpop.f32.mrf.mxu0
      %615 = vmatprep.mubr.bf16.mxu0 %v531
      %616 = vmatmul.mubr.bf16.gmra.mxu0 %v420
      %v617 = vpop.f32.mrf.mxu0
      %v618 = vadd.f32 0.0, %v617
      %v619 = vpop.f32.mrf.mxu0
      %v620 = vpop.f32.mrf.mxu0
      %v621 = vadd.f32 0.0, %v620
      %v622 = vpop.f32.mrf.mxu0
      %623 = vmatprep.mubr.bf16.mxu0 %v534
      %624 = vmatmul.mubr.bf16.gmra.mxu0 %v422
      %v625 = vpop.f32.mrf.mxu0
      %v626 = vadd.f32 0.0, %v625
      %v627 = vpop.f32.mrf.mxu0
      %v628 = vpop.f32.mrf.mxu0
      %v629 = vadd.f32 0.0, %v628
      %v630 = vpop.f32.mrf.mxu0
      %631 = vmatprep.mubr.bf16.mxu0 %v537
      %632 = vmatmul.mubr.bf16.gmra.mxu0 %v424
      %v633 = vpop.f32.mrf.mxu0
      %v634 = vadd.f32 0.0, %v633
      %v635 = vpop.f32.mrf.mxu0
      %v636 = vpop.f32.mrf.mxu0
      %v637 = vadd.f32 0.0, %v636
      %v638 = vpop.f32.mrf.mxu0
      %639 = vmatprep.mubr.bf16.mxu0 %v540
      %640 = vmatmul.mubr.bf16.gmra.mxu0 %v426
      %v641 = vpop.f32.mrf.mxu0
      %v642 = vadd.f32 0.0, %v641
      %v643 = vpop.f32.mrf.mxu0
      %v644 = vpop.f32.mrf.mxu0
      %v645 = vadd.f32 0.0, %v644
      %v646 = vpop.f32.mrf.mxu0
      %647 = vmatprep.mubr.bf16.mxu0 %v543
      %648 = vmatmul.mubr.bf16.gmra.mxu0 %v428
      %v649 = vpop.f32.mrf.mxu0
      %v650 = vadd.f32 0.0, %v649
      %v651 = vpop.f32.mrf.mxu0
      %v652 = vpop.f32.mrf.mxu0
      %v653 = vadd.f32 0.0, %v652
      %v654 = vpop.f32.mrf.mxu0
      %655 = vmatprep.mubr.bf16.mxu0 %v546
      %656 = vmatmul.mubr.bf16.gmra.mxu0 %v430
      %v657 = vpop.f32.mrf.mxu0
      %v658 = vadd.f32 0.0, %v657
      %v659 = vpop.f32.mrf.mxu0
      %v660 = vpop.f32.mrf.mxu0
      %v661 = vadd.f32 0.0, %v660
      %v662 = vpop.f32.mrf.mxu0
      %663 = vmatprep.mubr.bf16.mxu0 %v549
      %664 = vmatmul.mubr.bf16.gmra.mxu0 %v432
      %v665 = vpop.f32.mrf.mxu0
      %v666 = vadd.f32 0.0, %v665
      %v667 = vpop.f32.mrf.mxu0
      %v668 = vpop.f32.mrf.mxu0
      %v669 = vadd.f32 0.0, %v668
      %v670 = vpop.f32.mrf.mxu0
      %671 = vmatprep.mubr.bf16.mxu0 %v552
      %672 = vmatmul.mubr.bf16.gmra.mxu0 %v434
      %v673 = vpop.f32.mrf.mxu0
      %v674 = vadd.f32 0.0, %v673
      %v675 = vpop.f32.mrf.mxu0
      %v676 = vpop.f32.mrf.mxu0
      %v677 = vadd.f32 0.0, %v676
      %v678 = vpop.f32.mrf.mxu0
      %679 = vmatprep.mubr.bf16.mxu0 %v555
      %680 = vmatmul.mubr.bf16.gmra.mxu0 %v436
      %v681 = vpop.f32.mrf.mxu0
      %v682 = vadd.f32 0.0, %v681
      %v683 = vpop.f32.mrf.mxu0
      %v684 = vpop.f32.mrf.mxu0
      %v685 = vadd.f32 0.0, %v684
      %v686 = vpop.f32.mrf.mxu0
      %687 = vmatprep.mubr.bf16.mxu0 %v558
      %688 = vmatmul.mubr.bf16.gmra.mxu0 %v438
      %v689 = vpop.f32.mrf.mxu0
      %v690 = vadd.f32 0.0, %v689
      %v691 = vpop.f32.mrf.mxu0
      %v692 = vpop.f32.mrf.mxu0
      %v693 = vadd.f32 0.0, %v692
      %v694 = vpop.f32.mrf.mxu0
      %695 = vmatprep.mubr.bf16.mxu0 %v561
      %696 = vmatmul.mubr.bf16.gmra.mxu0 %v440
      %v697 = vpop.f32.mrf.mxu0
      %v698 = vadd.f32 0.0, %v697
      %v699 = vpop.f32.mrf.mxu0
      %v700 = vpop.f32.mrf.mxu0
      %v701 = vadd.f32 0.0, %v700
      %v702 = vpop.f32.mrf.mxu0
      %703 = vmatprep.mubr.bf16.mxu0 %v564
      %704 = vmatmul.mubr.bf16.gmra.mxu0 %v442
      %v705 = vpop.f32.mrf.mxu0
      %v706 = vadd.f32 0.0, %v705
      %v707 = vpop.f32.mrf.mxu0
      %v708 = vpop.f32.mrf.mxu0
      %v709 = vadd.f32 0.0, %v708
      %v710 = vpop.f32.mrf.mxu0
      %711 = vmatprep.mubr.bf16.mxu0 %v567
      %712 = vmatmul.mubr.bf16.gmra.mxu0 %v444
      %v713 = vpop.f32.mrf.mxu0
      %v714 = vadd.f32 0.0, %v713
      %v715 = vpop.f32.mrf.mxu0
      %v716 = vpop.f32.mrf.mxu0
      %v717 = vadd.f32 0.0, %v716
      %v718 = vpop.f32.mrf.mxu0
      %719 = vmatprep.mubr.bf16.mxu0 %v570
      %720 = vmatmul.mubr.bf16.gmra.mxu0 %v446
      %v721 = vpop.f32.mrf.mxu0
      %v722 = vadd.f32 0.0, %v721
      %v723 = vpop.f32.mrf.mxu0
      %v724 = vpop.f32.mrf.mxu0
      %v725 = vadd.f32 0.0, %v724
      %v726 = vpop.f32.mrf.mxu0
      %727 = vmatprep.mubr.bf16.mxu0 %v573
      %728 = vmatmul.mubr.bf16.gmra.mxu0 %v448
      %v729 = vpop.f32.mrf.mxu0
      %v730 = vadd.f32 0.0, %v729
      %v731 = vpop.f32.mrf.mxu0
      %v732 = vpop.f32.mrf.mxu0
      %v733 = vadd.f32 0.0, %v732
      %v734 = vpop.f32.mrf.mxu0
      %735 = vdwg.mxu0
      %v736 = vld [vmem:[%s256] sm:$0x1]
      %v738 = vlaneseq
      %v739 = vshrl.u32 %v738, 7
      %v740 = vsub.s32 0, %v739
      %v741 = vrot.slane %v736, %v740
      %v743 = vmul.f32 %v610, %v741
      %v744 = vmul.f32 %v613, %v741
      %v745 = vmul.f32 %v618, %v741
      %v746 = vmul.f32 %v621, %v741
      %v747 = vmul.f32 %v626, %v741
      %v748 = vmul.f32 %v629, %v741
      %v749 = vmul.f32 %v634, %v741
      %v750 = vmul.f32 %v637, %v741
      %v751 = vmul.f32 %v642, %v741
      %v752 = vmul.f32 %v645, %v741
      %v753 = vmul.f32 %v650, %v741
      %v754 = vmul.f32 %v653, %v741
      %v755 = vmul.f32 %v658, %v741
      %v756 = vmul.f32 %v661, %v741
      %v757 = vmul.f32 %v666, %v741
      %v758 = vmul.f32 %v669, %v741
      %v759 = vmul.f32 %v674, %v741
      %v760 = vmul.f32 %v677, %v741
      %v761 = vmul.f32 %v682, %v741
      %v762 = vmul.f32 %v685, %v741
      %v763 = vmul.f32 %v690, %v741
      %v764 = vmul.f32 %v693, %v741
      %v765 = vmul.f32 %v698, %v741
      %v766 = vmul.f32 %v701, %v741
      %v767 = vmul.f32 %v706, %v741
      %v768 = vmul.f32 %v709, %v741
      %v769 = vmul.f32 %v714, %v741
      %v770 = vmul.f32 %v717, %v741
      %v771 = vmul.f32 %v722, %v741
      %v772 = vmul.f32 %v725, %v741
      %v773 = vmul.f32 %v730, %v741
      %v774 = vmul.f32 %v733, %v741
      %v775 = vld [vmem:[%s259] sm:$0x1]
      %v777 = vlaneseq
      %v778 = vshrl.u32 %v777, 7
      %v779 = vsub.s32 0, %v778
      %v780 = vrot.slane %v775, %v779
      %v782 = vadd.f32 %v743, %v780
      %v783 = vadd.f32 %v744, %v780
      %v784 = vadd.f32 %v745, %v780
      %v785 = vadd.f32 %v746, %v780
      %v786 = vadd.f32 %v747, %v780
      %v787 = vadd.f32 %v748, %v780
      %v788 = vadd.f32 %v749, %v780
      %v789 = vadd.f32 %v750, %v780
      %v790 = vadd.f32 %v751, %v780
      %v791 = vadd.f32 %v752, %v780
      %v792 = vadd.f32 %v753, %v780
      %v793 = vadd.f32 %v754, %v780
      %v794 = vadd.f32 %v755, %v780
      %v795 = vadd.f32 %v756, %v780
      %v796 = vadd.f32 %v757, %v780
      %v797 = vadd.f32 %v758, %v780
      %v798 = vadd.f32 %v759, %v780
      %v799 = vadd.f32 %v760, %v780
      %v800 = vadd.f32 %v761, %v780
      %v801 = vadd.f32 %v762, %v780
      %v802 = vadd.f32 %v763, %v780
      %v803 = vadd.f32 %v764, %v780
      %v804 = vadd.f32 %v765, %v780
      %v805 = vadd.f32 %v766, %v780
      %v806 = vadd.f32 %v767, %v780
      %v807 = vadd.f32 %v768, %v780
      %v808 = vadd.f32 %v769, %v780
      %v809 = vadd.f32 %v770, %v780
      %v810 = vadd.f32 %v771, %v780
      %v811 = vadd.f32 %v772, %v780
      %v812 = vadd.f32 %v773, %v780
      %v813 = vadd.f32 %v774, %v780
      %v814 = vmax.f32 %v782, 0.0
      %v815 = vmax.f32 %v783, 0.0
      %v816 = vmax.f32 %v784, 0.0
      %v817 = vmax.f32 %v785, 0.0
      %v818 = vmax.f32 %v786, 0.0
      %v819 = vmax.f32 %v787, 0.0
      %v820 = vmax.f32 %v788, 0.0
      %v821 = vmax.f32 %v789, 0.0
      %v822 = vmax.f32 %v790, 0.0
      %v823 = vmax.f32 %v791, 0.0
      %v824 = vmax.f32 %v792, 0.0
      %v825 = vmax.f32 %v793, 0.0
      %v826 = vmax.f32 %v794, 0.0
      %v827 = vmax.f32 %v795, 0.0
      %v828 = vmax.f32 %v796, 0.0
      %v829 = vmax.f32 %v797, 0.0
      %v830 = vmax.f32 %v798, 0.0
      %v831 = vmax.f32 %v799, 0.0
      %v832 = vmax.f32 %v800, 0.0
      %v833 = vmax.f32 %v801, 0.0
      %v834 = vmax.f32 %v802, 0.0
      %v835 = vmax.f32 %v803, 0.0
      %v836 = vmax.f32 %v804, 0.0
      %v837 = vmax.f32 %v805, 0.0
      %v838 = vmax.f32 %v806, 0.0
      %v839 = vmax.f32 %v807, 0.0
      %v840 = vmax.f32 %v808, 0.0
      %v841 = vmax.f32 %v809, 0.0
      %v842 = vmax.f32 %v810, 0.0
      %v843 = vmax.f32 %v811, 0.0
      %v844 = vmax.f32 %v812, 0.0
      %v845 = vmax.f32 %v813, 0.0
      %v846 = vpack.c.bf16 %v815, %v814
      %v847 = vpack.c.bf16 %v817, %v816
      %v848 = vpack.c.bf16 %v819, %v818
      %v849 = vpack.c.bf16 %v821, %v820
      %v850 = vpack.c.bf16 %v823, %v822
      %v851 = vpack.c.bf16 %v825, %v824
      %v852 = vpack.c.bf16 %v827, %v826
      %v853 = vpack.c.bf16 %v829, %v828
      %v854 = vpack.c.bf16 %v831, %v830
      %v855 = vpack.c.bf16 %v833, %v832
      %v856 = vpack.c.bf16 %v835, %v834
      %v857 = vpack.c.bf16 %v837, %v836
      %v858 = vpack.c.bf16 %v839, %v838
      %v859 = vpack.c.bf16 %v841, %v840
      %v860 = vpack.c.bf16 %v843, %v842
      %v861 = vpack.c.bf16 %v845, %v844
      %v878 = vunpack.c.l.b16 %v846
      %v879 = vunpack.c.h.b16 %v846
      %v880 = vunpack.c.l.b16 %v847
      %v881 = vunpack.c.h.b16 %v847
      %v882 = vunpack.c.l.b16 %v848
      %v883 = vunpack.c.h.b16 %v848
      %v884 = vunpack.c.l.b16 %v849
      %v885 = vunpack.c.h.b16 %v849
      %v886 = vunpack.c.l.b16 %v850
      %v887 = vunpack.c.h.b16 %v850
      %v888 = vunpack.c.l.b16 %v851
      %v889 = vunpack.c.h.b16 %v851
      %v890 = vunpack.c.l.b16 %v852
      %v891 = vunpack.c.h.b16 %v852
      %v892 = vunpack.c.l.b16 %v853
      %v893 = vunpack.c.h.b16 %v853
      %v894 = vunpack.c.l.b16 %v854
      %v895 = vunpack.c.h.b16 %v854
      %v896 = vunpack.c.l.b16 %v855
      %v897 = vunpack.c.h.b16 %v855
      %v898 = vunpack.c.l.b16 %v856
      %v899 = vunpack.c.h.b16 %v856
      %v900 = vunpack.c.l.b16 %v857
      %v901 = vunpack.c.h.b16 %v857
      %v902 = vunpack.c.l.b16 %v858
      %v903 = vunpack.c.h.b16 %v858
      %v904 = vunpack.c.l.b16 %v859
      %v905 = vunpack.c.h.b16 %v859
      %v906 = vunpack.c.l.b16 %v860
      %v907 = vunpack.c.h.b16 %v860
      %v908 = vunpack.c.l.b16 %v861
      %v909 = vunpack.c.h.b16 %v861
      %v910 = vpack.c.b16 %v878, %v878
      %v911 = vpack.c.b16 %v879, %v879
      %v912 = vpack.c.b16 %v880, %v880
      %v913 = vpack.c.b16 %v881, %v881
      %v914 = vpack.c.b16 %v882, %v882
      %v915 = vpack.c.b16 %v883, %v883
      %v916 = vpack.c.b16 %v884, %v884
      %v917 = vpack.c.b16 %v885, %v885
      %v918 = vpack.c.b16 %v886, %v886
      %v919 = vpack.c.b16 %v887, %v887
      %v920 = vpack.c.b16 %v888, %v888
      %v921 = vpack.c.b16 %v889, %v889
      %v922 = vpack.c.b16 %v890, %v890
      %v923 = vpack.c.b16 %v891, %v891
      %v924 = vpack.c.b16 %v892, %v892
      %v925 = vpack.c.b16 %v893, %v893
      %v926 = vpack.c.b16 %v894, %v894
      %v927 = vpack.c.b16 %v895, %v895
      %v928 = vpack.c.b16 %v896, %v896
      %v929 = vpack.c.b16 %v897, %v897
      %v930 = vpack.c.b16 %v898, %v898
      %v931 = vpack.c.b16 %v899, %v899
      %v932 = vpack.c.b16 %v900, %v900
      %v933 = vpack.c.b16 %v901, %v901
      %v934 = vpack.c.b16 %v902, %v902
      %v935 = vpack.c.b16 %v903, %v903
      %v936 = vpack.c.b16 %v904, %v904
      %v937 = vpack.c.b16 %v905, %v905
      %v938 = vpack.c.b16 %v906, %v906
      %v939 = vpack.c.b16 %v907, %v907
      %v940 = vpack.c.b16 %v908, %v908
      %v941 = vpack.c.b16 %v909, %v909
      %vm974 = vcmask 519168
      %975 = vst.msk [vmem:[%s267] sm:$0xf] %vm974, %v910
      %976 = vst.msk [vmem:[%s267 + $0x4] sm:$0xf] %vm974, %v911
      %977 = vst.msk [vmem:[%s267 + $0x8] sm:$0xf] %vm974, %v912
      %978 = vst.msk [vmem:[%s267 + $0xc] sm:$0xf] %vm974, %v913
      %979 = vst.msk [vmem:[%s267 + $0x10] sm:$0xf] %vm974, %v914
      %980 = vst.msk [vmem:[%s267 + $0x14] sm:$0xf] %vm974, %v915
      %981 = vst.msk [vmem:[%s267 + $0x18] sm:$0xf] %vm974, %v916
      %982 = vst.msk [vmem:[%s267 + $0x1c] sm:$0xf] %vm974, %v917
      %983 = vst.msk [vmem:[%s267 + $0x20] sm:$0xf] %vm974, %v918
      %984 = vst.msk [vmem:[%s267 + $0x24] sm:$0xf] %vm974, %v919
      %985 = vst.msk [vmem:[%s267 + $0x28] sm:$0xf] %vm974, %v920
      %986 = vst.msk [vmem:[%s267 + $0x2c] sm:$0xf] %vm974, %v921
      %987 = vst.msk [vmem:[%s267 + $0x30] sm:$0xf] %vm974, %v922
      %988 = vst.msk [vmem:[%s267 + $0x34] sm:$0xf] %vm974, %v923
      %989 = vst.msk [vmem:[%s267 + $0x38] sm:$0xf] %vm974, %v924
      %990 = vst.msk [vmem:[%s267 + $0x3c] sm:$0xf] %vm974, %v925
      %991 = vst.msk [vmem:[%s267 + $0x40] sm:$0xf] %vm974, %v926
      %992 = vst.msk [vmem:[%s267 + $0x44] sm:$0xf] %vm974, %v927
      %993 = vst.msk [vmem:[%s267 + $0x48] sm:$0xf] %vm974, %v928
      %994 = vst.msk [vmem:[%s267 + $0x4c] sm:$0xf] %vm974, %v929
      %995 = vst.msk [vmem:[%s267 + $0x50] sm:$0xf] %vm974, %v930
      %996 = vst.msk [vmem:[%s267 + $0x54] sm:$0xf] %vm974, %v931
      %997 = vst.msk [vmem:[%s267 + $0x58] sm:$0xf] %vm974, %v932
      %998 = vst.msk [vmem:[%s267 + $0x5c] sm:$0xf] %vm974, %v933
      %999 = vst.msk [vmem:[%s267 + $0x60] sm:$0xf] %vm974, %v934
      %1000 = vst.msk [vmem:[%s267 + $0x64] sm:$0xf] %vm974, %v935
      %1001 = vst.msk [vmem:[%s267 + $0x68] sm:$0xf] %vm974, %v936
      %1002 = vst.msk [vmem:[%s267 + $0x6c] sm:$0xf] %vm974, %v937
      %1003 = vst.msk [vmem:[%s267 + $0x70] sm:$0xf] %vm974, %v938
      %1004 = vst.msk [vmem:[%s267 + $0x74] sm:$0xf] %vm974, %v939
      %1005 = vst.msk [vmem:[%s267 + $0x78] sm:$0xf] %vm974, %v940
      %1006 = vst.msk [vmem:[%s267 + $0x7c] sm:$0xf] %vm974, %v941
      %s1007 = smul.u32 32, %s19
      %p1008 = scmp.lt.s32.totalorder %s1007, 255
      %s1009 = scalar_select %p1008, %s1007, 255
      %p1010 = scmp.lt.s32.totalorder %s20, 0
      %s1011 = scalar_select %p1010, %s20, 0
      %s1012 = sadd.s32 %s1011, %s1009
      %s1013 = smul.addr %s1012, 4
      %s1014 = scalar_lea.vmem %s4, %s1013
      // Predicated region
      $region37: #{tpu_custom_call.1} parent=35 // pred_check
        %p1015 = pneg %p151
      $region38: #{tpu_custom_call.1} parent=35 // pred_check_branch
        %1017 = sbr.rel (%p1015) target = $region40
      $region39: #{tpu_custom_call.1} parent=35 // pred_region
        %s1018 = smul.u32 32, %s19
      $region40: #{tpu_custom_call.1} parent=35 // pred_fallthru
        _
    $region36: #{tpu_custom_call.1} parent=5 // pred_fallthru
      _
    %p1019 = scmp.le.s32.totalorder 2, %s10
    // Predicated region
    $region41: #{tpu_custom_call.1} parent=5 // pred_check
      %p1020 = pneg %p1019
    $region42: #{tpu_custom_call.1} parent=5 // pred_check_branch
      %1022 = sbr.rel (%p1020) target = $region44
    $region43: #{tpu_custom_call.1} parent=5 // pred_region
      %s1023 = ssub.s32 %s10, 2
      // Predicated region
      $region45: #{tpu_custom_call.1} parent=43 // pred_check
        %p1024 = pneg %p157
      $region46: #{tpu_custom_call.1} parent=43 // pred_check_branch
        %1026 = sbr.rel (%p1024) target = $region48
      $region47: #{tpu_custom_call.1} parent=43 // pred_region
        %s1027 = smul.u32 32, %s21
        %p1028 = scmp.lt.s32.totalorder %s1027, 255
        %s1029 = scalar_select %p1028, %s1027, 255
        %p1030 = scmp.lt.s32.totalorder %s22, 0
        %s1031 = scalar_select %p1030, %s22, 0
        %s1032 = sadd.s32 %s1031, %s1029
        %s1033 = smul.addr %s1032, 4
        %s1034 = scalar_lea.vmem %s4, %s1033
      $region48: #{tpu_custom_call.1} parent=43 // pred_fallthru
        _
    $region44: #{tpu_custom_call.1} parent=5 // pred_fallthru
      _
  $region6: #{tpu_custom_call.1} parent=0 // loop_footer
    %s14 = sadd.s32 1, %s10
  $region7: #{tpu_custom_call.1} parent=0 // loop_footer_branch
    %9 = sbr.rel target = $region3
  $region8: #{tpu_custom_call.1} parent=0 // loop_exit
    _

</llo_original>
